<compile_context>
chip_gen: v6e
topology: v6e:2x2x1
jax: 0.10.0
libtpu: 0.0.40
codegen_flags: <defaults>
</compile_context>

<pallas_src>
import jax
import jax.numpy as jnp
from jax.experimental import pallas as pl
from jax.experimental.pallas import tpu as pltpu


# -----------------------------------------------------------------------------
# Pallas kernel: fused 3x3 conv (stride 1, pre-padded input) + bias + SiLU.
# -----------------------------------------------------------------------------
def _conv3x3_bias_silu_kernel(xm_ref, xh_ref, w_ref, b_ref, o_ref):
    """One (batch, cout-tile, row-tile) grid step.

    xm_ref : (1, TH, W+2, Cin)   bf16 main rows of the padded input tile
    xh_ref : (1, 2,  W+2, Cin)   bf16 2-row bottom halo (same padded array)
    w_ref  : (3, 3*Cin, TCO)     bf16 fused weights, kx folded into K
    b_ref  : (1, TCO)            f32 fused bias
    o_ref  : (1, TH*W, TCO)      output tile (channels on lanes)
    """
    th = xm_ref.shape[1]
    wp = xm_ref.shape[2]
    cin = xm_ref.shape[3]
    w_out = wp - 2
    hw = o_ref.shape[1]
    tco = o_ref.shape[2]
    rows = th + 2

    # Assemble the (TH+2, W+2, Cin) tile from the main block + 2-row halo.
    x_tile = jnp.concatenate([xm_ref[0], xh_ref[0]], axis=0)

    # Fold the 3 kx shifts into the matmul K dimension: one (rows*W, 3*Cin)
    # buffer, then 3 MXU matmuls (K = 3*Cin) instead of 9 (K = Cin).
    xcat = jnp.concatenate(
        [x_tile[:, kx:kx + w_out, :] for kx in range(3)], axis=-1
    ).reshape(rows * w_out, 3 * cin)

    # Bounded f32 accumulator (tile-sized), static unroll over the 3 ky taps;
    # the ky row-slices are static, row-aligned slices of xcat.
    acc = jnp.zeros((hw, tco), jnp.float32)
    for ky in range(3):
        start = ky * w_out
        acc = acc + jnp.dot(xcat[start:start + hw, :], w_ref[ky],
                            preferred_element_type=jnp.float32)

    # Fused epilogue: bias + SiLU.  exp + approx-reciprocal both land on the
    # EUP slot, so the epilogue is ~free when the MXU is the bottleneck.
    acc = acc + b_ref[...].astype(jnp.float32)
    y = acc * pl.reciprocal(1.0 + jnp.exp(-acc), approx=True)
    o_ref[...] = y[None].astype(o_ref.dtype)


def _conv3x3_bias_silu(x_nchw, w_oihw, bias, *, row_tile=64, cout_tile=128):
    """SiLU(conv3x3(x, w) + b), stride=1, padding=1.  NCHW in / NCHW out."""
    n, cin, h, w = map(int, x_nchw.shape)
    cout = int(w_oihw.shape[0])
    out_dtype = x_nchw.dtype

    # ---- tile sizes ---------------------------------------------------------
    th = min(h, row_tile)
    if th < h:
        th = max(8, (th // 8) * 8)      # multiple of 8 -> aligned output row blocks
    if th % 2:
        th += 1                         # size-2 halo block needs an even row tile
    nt = -(-h // th)
    hm = nt * th                        # rows covered by the row tiles (>= h)

    tco = cout_tile                     # lane-dense Cout tiles (multiple of 128)
    nco = -(-cout // tco)
    cout_p = nco * tco

    # ---- operand preparation (one fused XLA pass each way) -------------------
    # NCHW -> NHWC (channels on lanes), zero halo + bottom fill, bf16 operands.
    x_nhwc = jnp.transpose(x_nchw, (0, 2, 3, 1))
    x_pad = jnp.pad(x_nhwc, ((0, 0), (1, 1 + hm - h), (1, 1), (0, 0)))
    x_pad = x_pad.astype(jnp.bfloat16)

    # (Cout, Cin, 3, 3) -> (3, 3*Cin, Cout_p): each ky tap is a matmul RHS with
    # the kx shifts folded into K; Cout zero-padded to a multiple of 128.
    w_hwio = jnp.transpose(w_oihw, (2, 3, 1, 0))
    w_hwio = jnp.pad(w_hwio, ((0, 0), (0, 0), (0, 0), (0, cout_p - cout)))
    w_cat = w_hwio.reshape(3, 3 * cin, cout_p).astype(jnp.bfloat16)
    b2d = jnp.pad(bias, (0, cout_p - cout)).reshape(1, cout_p).astype(jnp.float32)

    wp = w + 2
    hw_tile = th * w

    cost = pl.CostEstimate(
        flops=2 * 9 * n * hm * w * cin * cout_p,
        transcendentals=n * hm * w * cout_p,
        bytes_accessed=(x_pad.size * 2 + w_cat.size * 2 + b2d.size * 4
                        + n * hm * w * cout_p * jnp.dtype(out_dtype).itemsize),
    )

    out = pl.pallas_call(
        _conv3x3_bias_silu_kernel,
        out_shape=jax.ShapeDtypeStruct((n, hm * w, cout_p), out_dtype),
        grid=(n, nco, nt),
        in_specs=[
            # main TH rows of the padded input for this row tile
            pl.BlockSpec((1, th, wp, cin), lambda b, co, t: (b, t, 0, 0)),
            # 2-row bottom halo: same padded array, offset by one row tile
            pl.BlockSpec((1, 2, wp, cin),
                         lambda b, co, t: (b, (t + 1) * (th // 2), 0, 0)),
            # fused weights / bias: grid-invariant along batch & row tiles
            pl.BlockSpec((3, 3 * cin, tco), lambda b, co, t: (0, 0, co)),
            pl.BlockSpec((1, tco), lambda b, co, t: (0, co)),
        ],
        out_specs=pl.BlockSpec((1, hw_tile, tco), lambda b, co, t: (b, t, co)),
        compiler_params=pltpu.CompilerParams(
            dimension_semantics=("parallel", "parallel", "parallel"),
            vmem_limit_bytes=32 * 1024 * 1024,
        ),
        cost_estimate=cost,
    )(x_pad, x_pad, w_cat, b2d)

    # (N, HM*W, Cout_p) -> trim row/channel padding -> NCHW interface layout.
    out = out.reshape(n, hm, w, cout_p)[:, :h, :, :cout]
    return jnp.transpose(out, (0, 3, 1, 2))


# -----------------------------------------------------------------------------
# Branch/BN fusion (exact RepVGG re-parameterisation), plain JAX on weights.
# -----------------------------------------------------------------------------
def _fuse_conv_bn(kernel, gamma, beta, mean, var, eps):
    std = jnp.sqrt(var + eps)
    t = (gamma / std).reshape(-1, 1, 1, 1)
    return kernel * t, beta - mean * gamma / std


def _repvgg_fused_weights(params, in_channels, groups=1, eps=1e-5):
    d = params['dense']
    k3, b3 = _fuse_conv_bn(d['w'], d['gamma'], d['beta'], d['mean'], d['var'], eps)

    o = params['one']
    k1, b1 = _fuse_conv_bn(o['w'], o['gamma'], o['beta'], o['mean'], o['var'], eps)
    k1 = jnp.pad(k1, ((0, 0), (0, 0), (1, 1), (1, 1)))        # 1x1 -> centered 3x3

    ident = params.get('identity')
    if ident is not None:
        out_channels = int(d['w'].shape[0])
        assert out_channels == in_channels, (
            "identity branch requires out_channels == in_channels (and stride 1)")
        input_dim = in_channels // groups
        idk = jnp.zeros((in_channels, input_dim, 3, 3), jnp.float32)
        rows = jnp.arange(in_channels)
        idk = idk.at[rows, rows % input_dim, 1, 1].set(1.0)
        kid, bid = _fuse_conv_bn(idk, ident['gamma'], ident['beta'],
                                 ident['mean'], ident['var'], eps)
    else:
        kid, bid = 0.0, 0.0

    return k3 + k1 + kid, b3 + b1 + bid


def repvgg_block_forward(x_nchw, params, *, in_channels, groups=1, eps=1e-5,
                         row_tile=64, cout_tile=128):
    """RepVGGBlock.forward (deploy=False, use_se=False, stride=1, padding=1)."""
    assert groups == 1, "TODO(synk): grouped conv not implemented"
    w_eq, b_eq = _repvgg_fused_weights(params, in_channels, groups, eps)
    return _conv3x3_bias_silu(x_nchw, w_eq, b_eq,
                              row_tile=row_tile, cout_tile=cout_tile)


# -----------------------------------------------------------------------------
if __name__ == "__main__":
    key = jax.random.PRNGKey(0)
    n, cin, h, w = 2, 4, 16, 16
    cout = cin                      # identity branch requires out == in, stride == 1
    keys = jax.random.split(key, 8)

    def bn_params(k):
        k1, k2, k3, k4 = jax.random.split(k, 4)
        return dict(
            gamma=jax.random.uniform(k1, (cout,), jnp.float32, 0.5, 1.5),
            beta=jax.random.normal(k2, (cout,), jnp.float32) * 0.1,
            mean=jax.random.normal(k3, (cout,), jnp.float32) * 0.1,
            var=jax.random.uniform(k4, (cout,), jnp.float32, 0.5, 1.5),
        )

    params = {
        'dense': dict(w=jax.random.normal(keys[0], (cout, cin, 3, 3), jnp.float32) * 0.1,
                      **bn_params(keys[1])),
        'one': dict(w=jax.random.normal(keys[2], (cout, cin, 1, 1), jnp.float32) * 0.1,
                    **bn_params(keys[3])),
        'identity': bn_params(keys[4]),
    }
    x = jax.random.normal(keys[5], (n, cin, h, w), jnp.float32)

    # row_tile=8 exercises multi-row-tile + halo handling at this small shape.
    out = repvgg_block_forward(x, params, in_channels=cin, row_tile=8)
    out = jax.block_until_ready(out)

    # --- plain-JAX reference: three explicit branches (eval-mode BN) + SiLU ---
    def conv_nchw(xx, ww, padding):
        return jax.lax.conv_general_dilated(
            xx, ww, window_strides=(1, 1), padding=[(padding, padding)] * 2,
            dimension_numbers=('NCHW', 'OIHW', 'NCHW'))

    def bn_eval(xx, p, eps=1e-5):
        scale = (p['gamma'] / jnp.sqrt(p['var'] + eps)).reshape(1, -1, 1, 1)
        shift = (p['beta'] - p['mean'] * p['gamma']
                 / jnp.sqrt(p['var'] + eps)).reshape(1, -1, 1, 1)
        return xx * scale + shift

    dense = bn_eval(conv_nchw(x, params['dense']['w'], 1), params['dense'])
    one = bn_eval(conv_nchw(x, params['one']['w'], 0), params['one'])
    ident = bn_eval(x, params['identity'])
    ref = jax.nn.silu(dense + one + ident)

    assert out.shape == ref.shape
    assert out.dtype == ref.dtype
    # bf16 matmul operands + approximate-reciprocal sigmoid -> loose tolerance.
    assert jnp.allclose(out, ref, atol=3e-2, rtol=2e-2), float(
        jnp.max(jnp.abs(out - ref)))
    print("KERNEL_OK")
</pallas_src>

<mosaic_0001>
module attributes {stable_mosaic.version = 11 : i64} {
  func.func @_conv3x3_bias_silu_kernel(%arg0: i32, %arg1: i32, %arg2: i32, %arg3: memref<1x8x18x4xbf16, #tpu.memory_space<vmem>>, %arg4: memref<1x2x18x4xbf16, #tpu.memory_space<vmem>>, %arg5: memref<3x12x128xbf16, #tpu.memory_space<vmem>>, %arg6: memref<1x128xf32, #tpu.memory_space<vmem>>, %arg7: memref<1x128x128xf32, #tpu.memory_space<vmem>>) attributes {dimension_semantics = [#tpu.dimension_semantics<parallel>, #tpu.dimension_semantics<parallel>, #tpu.dimension_semantics<parallel>], iteration_bounds = array<i64: 2, 1, 2>, scalar_prefetch = 0 : i64, scratch_operands = 0 : i64, tpu.core_type = #tpu.core_type<tc>, window_params = [{transform_indices = @transform_0, window_bounds = array<i64: 1, 8, 18, 4>}, {transform_indices = @transform_1, window_bounds = array<i64: 1, 2, 18, 4>}, {transform_indices = @transform_2, window_bounds = array<i64: 3, 12, 128>}, {transform_indices = @transform_3, window_bounds = array<i64: 1, 128>}, {transform_indices = @transform_4, window_bounds = array<i64: 1, 128, 128>}]} {
    %c0 = arith.constant 0 : index
    %c0_0 = arith.constant 0 : index
    %c0_1 = arith.constant 0 : index
    %c0_2 = arith.constant 0 : index
    %0 = vector.load %arg3[%c0, %c0_0, %c0_1, %c0_2] : memref<1x8x18x4xbf16, #tpu.memory_space<vmem>>, vector<1x8x18x4xbf16>
    %1 = vector.shape_cast %0 : vector<1x8x18x4xbf16> to vector<8x18x4xbf16>
    %c0_3 = arith.constant 0 : index
    %c0_4 = arith.constant 0 : index
    %c0_5 = arith.constant 0 : index
    %c0_6 = arith.constant 0 : index
    %2 = vector.load %arg4[%c0_3, %c0_4, %c0_5, %c0_6] : memref<1x2x18x4xbf16, #tpu.memory_space<vmem>>, vector<1x2x18x4xbf16>
    %3 = vector.shape_cast %2 : vector<1x2x18x4xbf16> to vector<2x18x4xbf16>
    %4 = tpu.concatenate %1, %3 in 0 : vector<8x18x4xbf16>, vector<2x18x4xbf16> -> vector<10x18x4xbf16>
    %5 = vector.extract_strided_slice %4 {offsets = [0, 0, 0], sizes = [10, 16, 4], strides = [1, 1, 1]} : vector<10x18x4xbf16> to vector<10x16x4xbf16>
    %6 = vector.extract_strided_slice %4 {offsets = [0, 1, 0], sizes = [10, 16, 4], strides = [1, 1, 1]} : vector<10x18x4xbf16> to vector<10x16x4xbf16>
    %7 = vector.extract_strided_slice %4 {offsets = [0, 2, 0], sizes = [10, 16, 4], strides = [1, 1, 1]} : vector<10x18x4xbf16> to vector<10x16x4xbf16>
    %8 = tpu.concatenate %5, %6, %7 in 2 : vector<10x16x4xbf16>, vector<10x16x4xbf16>, vector<10x16x4xbf16> -> vector<10x16x12xbf16>
    %9 = vector.shape_cast %8 : vector<10x16x12xbf16> to vector<160x12xbf16>
    %cst = arith.constant 0.000000e+00 : f32
    %10 = vector.broadcast %cst : f32 to vector<128x128xf32>
    %11 = vector.extract_strided_slice %9 {offsets = [0, 0], sizes = [128, 12], strides = [1, 1]} : vector<160x12xbf16> to vector<128x12xbf16>
    %c0_7 = arith.constant 0 : index
    %c0_8 = arith.constant 0 : index
    %c0_9 = arith.constant 0 : index
    %12 = vector.load %arg5[%c0_7, %c0_8, %c0_9] : memref<3x12x128xbf16, #tpu.memory_space<vmem>>, vector<1x12x128xbf16>
    %13 = vector.shape_cast %12 : vector<1x12x128xbf16> to vector<12x128xbf16>
    %cst_10 = arith.constant dense<0.000000e+00> : vector<128x128xf32>
    %14 = tpu.matmul %11, %13, %cst_10 {dimension_numbers = #tpu.dot_dimension_numbers<[1], [0], [0], [1], [0, 0, 1, 1], [], []>} : vector<128x12xbf16>, vector<12x128xbf16>, vector<128x128xf32> -> vector<128x128xf32>
    %15 = arith.addf %10, %14 : vector<128x128xf32>
    %16 = vector.extract_strided_slice %9 {offsets = [16, 0], sizes = [128, 12], strides = [1, 1]} : vector<160x12xbf16> to vector<128x12xbf16>
    %c1 = arith.constant 1 : index
    %c0_11 = arith.constant 0 : index
    %c0_12 = arith.constant 0 : index
    %17 = vector.load %arg5[%c1, %c0_11, %c0_12] : memref<3x12x128xbf16, #tpu.memory_space<vmem>>, vector<1x12x128xbf16>
    %18 = vector.shape_cast %17 : vector<1x12x128xbf16> to vector<12x128xbf16>
    %cst_13 = arith.constant dense<0.000000e+00> : vector<128x128xf32>
    %19 = tpu.matmul %16, %18, %cst_13 {dimension_numbers = #tpu.dot_dimension_numbers<[1], [0], [0], [1], [0, 0, 1, 1], [], []>} : vector<128x12xbf16>, vector<12x128xbf16>, vector<128x128xf32> -> vector<128x128xf32>
    %20 = arith.addf %15, %19 : vector<128x128xf32>
    %21 = vector.extract_strided_slice %9 {offsets = [32, 0], sizes = [128, 12], strides = [1, 1]} : vector<160x12xbf16> to vector<128x12xbf16>
    %c2 = arith.constant 2 : index
    %c0_14 = arith.constant 0 : index
    %c0_15 = arith.constant 0 : index
    %22 = vector.load %arg5[%c2, %c0_14, %c0_15] : memref<3x12x128xbf16, #tpu.memory_space<vmem>>, vector<1x12x128xbf16>
    %23 = vector.shape_cast %22 : vector<1x12x128xbf16> to vector<12x128xbf16>
    %cst_16 = arith.constant dense<0.000000e+00> : vector<128x128xf32>
    %24 = tpu.matmul %21, %23, %cst_16 {dimension_numbers = #tpu.dot_dimension_numbers<[1], [0], [0], [1], [0, 0, 1, 1], [], []>} : vector<128x12xbf16>, vector<12x128xbf16>, vector<128x128xf32> -> vector<128x128xf32>
    %25 = arith.addf %20, %24 : vector<128x128xf32>
    %c0_17 = arith.constant 0 : index
    %c0_18 = arith.constant 0 : index
    %26 = vector.load %arg6[%c0_17, %c0_18] : memref<1x128xf32, #tpu.memory_space<vmem>>, vector<1x128xf32>
    %27 = vector.broadcast %26 : vector<1x128xf32> to vector<128x128xf32>
    %28 = arith.addf %25, %27 : vector<128x128xf32>
    %cst_19 = arith.constant 0.000000e+00 : f32
    %29 = vector.broadcast %cst_19 : f32 to vector<128x128xf32>
    %30 = arith.subf %29, %28 : vector<128x128xf32>
    %31 = math.exp %30 : vector<128x128xf32>
    %cst_20 = arith.constant 1.000000e+00 : f32
    %32 = vector.broadcast %cst_20 : f32 to vector<128x128xf32>
    %33 = arith.addf %32, %31 : vector<128x128xf32>
    %34 = tpu.reciprocal %33 {approx = true} : vector<128x128xf32> -> vector<128x128xf32>
    %35 = arith.mulf %28, %34 : vector<128x128xf32>
    %36 = vector.shape_cast %35 : vector<128x128xf32> to vector<1x128x128xf32>
    %c0_21 = arith.constant 0 : index
    %c0_22 = arith.constant 0 : index
    %c0_23 = arith.constant 0 : index
    %37 = vector.load %arg7[%c0_21, %c0_22, %c0_23] : memref<1x128x128xf32, #tpu.memory_space<vmem>>, vector<1x128x128xf32>
    tpu.vector_store %arg7[%c0_21, %c0_22, %c0_23], %36 {strides = array<i32>} : memref<1x128x128xf32, #tpu.memory_space<vmem>>, vector<1x128x128xf32>,
    return
  }
  func.func @transform_0(%arg0: i32, %arg1: i32, %arg2: i32) -> (i32, i32, i32, i32) {
    %c0_i32 = arith.constant 0 : i32
    %c0_i32_0 = arith.constant 0 : i32
    %c0_i32_1 = arith.constant 0 : i32
    return %arg0, %arg2, %c0_i32, %c0_i32_0 : i32, i32, i32, i32
  }
  func.func @transform_1(%arg0: i32, %arg1: i32, %arg2: i32) -> (i32, i32, i32, i32) {
    %c1_i32 = arith.constant 1 : i32
    %0 = arith.addi %arg2, %c1_i32 : i32
    %c4_i32 = arith.constant 4 : i32
    %1 = arith.muli %0, %c4_i32 : i32
    %c0_i32 = arith.constant 0 : i32
    %c0_i32_0 = arith.constant 0 : i32
    %c0_i32_1 = arith.constant 0 : i32
    return %arg0, %1, %c0_i32, %c0_i32_0 : i32, i32, i32, i32
  }
  func.func @transform_2(%arg0: i32, %arg1: i32, %arg2: i32) -> (i32, i32, i32) {
    %c0_i32 = arith.constant 0 : i32
    %c0_i32_0 = arith.constant 0 : i32
    %c0_i32_1 = arith.constant 0 : i32
    return %c0_i32, %c0_i32_0, %arg1 : i32, i32, i32
  }
  func.func @transform_3(%arg0: i32, %arg1: i32, %arg2: i32) -> (i32, i32) {
    %c0_i32 = arith.constant 0 : i32
    %c0_i32_0 = arith.constant 0 : i32
    return %c0_i32, %arg1 : i32, i32
  }
  func.func @transform_4(%arg0: i32, %arg1: i32, %arg2: i32) -> (i32, i32, i32) {
    %c0_i32 = arith.constant 0 : i32
    return %arg0, %arg2, %arg1 : i32, i32, i32
  }
}

</mosaic_0001>

<llo_original>
// kernel: tpu_custom_call.1
$region0: #{tpu_custom_call.1}
  #allocation0 [shape = 'u32[]', space=smem, size = 0x4, offset = 0x4, fixed_abs, tag = 'smem constant byte address 0x4 - core index']
  #allocation1 [shape = 'u32[144,128]{1,0:T(1,128)}', space=vmem, size = 0x12000, scoped, tag = 'internal scratch']
  %s0 = inlined_call_operand.vmem [shape: bf16[2,18,18,4], index: 0, kind: input, shape index: {}]
  %s1 = inlined_call_operand.vmem [shape: bf16[2,18,18,4], index: 1, kind: input, shape index: {}]
  %s2 = inlined_call_operand.vmem [shape: bf16[3,12,128], index: 2, kind: input, shape index: {}]
  %s3 = inlined_call_operand.vmem [shape: f32[1,128], index: 3, kind: input, shape index: {}]
  %s4 = inlined_call_operand.hbm [shape: f32[2,256,128], index: 4, kind: output, shape index: {}]
  %s5 = sld [smem:[#allocation0]]
  $region49: #{tpu_custom_call.1} parent=0
    _
  %s7 = ssub.s32 1, %s5
  %s8 = scalar_select 0, %s7, %s5
  $region1: #{tpu_custom_call.1} parent=0
    #allocation2 [shape = 'u8[131072]{0}', space=vmem, size = 0x20000, scoped, tag = 'output window, operand 0']
    #allocation3 [shape = 's32[2]{0}', space=sflag, size = 0x8, scoped, tag = 'scoped memory for tpu_custom_call.1']
    %9 = vsyncpa [#allocation3], 0
    %s10 = scalar_lea.sflag [#allocation3], 1
    %11 = vsyncpa %s10, 0
    loop: start=0, step=1, limit=6
    $region2: #{tpu_custom_call.1} parent=1 // loop_pre_header
      _
    $region3: #{tpu_custom_call.1} parent=1 // loop_header
      %s13 = sphi 0, %s17
      %p14 = scmp.ge.s32.totalorder %s13, 6
      %s20 = sphi 0, %s39
      %s21 = sphi 0, %s35
      %s22 = sphi 0, %s31
      %s23 = sphi 0, %s20
      %s24 = sphi 0, %s21
      %s25 = sphi 0, %s22
      %s26 = sphi 0, %s23
      %s27 = sphi 0, %s24
      %s28 = sphi 0, %s25
      %s44 = sphi 0, %s46
      %s47 = sphi 0, %s44
      %s48 = sphi 0, %s47
      %s64 = sphi 0, %s48
      %s76 = sphi 0, %s78
      %s79 = sphi 0, %s76
      %s80 = sphi 0, %s79
      %s96 = sphi 0, %s80
      %s102 = sphi 0, %s104
      %s105 = sphi 0, %s102
      %s106 = sphi 0, %s105
      %s122 = sphi 0, %s106
      %s128 = sphi 0, %s130
      %s131 = sphi 0, %s128
      %s132 = sphi 0, %s131
      %s148 = sphi 0, %s132
      %s158 = sphi 0, %s160
      %s161 = sphi 0, %s158
      %s162 = sphi 0, %s161
      %s178 = sphi 0, %s162
    $region4: #{tpu_custom_call.1} parent=1 // loop_header_branch
      %16 = sbr.rel (%p14) target = $region8
    $region5: #{tpu_custom_call.1} parent=1 // loop_body
      %s18 = ssub.s32 %s13, 1
      %s19 = ssub.s32 %s13, 2
      %s29 = sadd.s32 1, %s22
      %p30 = scmp.ge.s32.totalorder %s29, 2
      %s31 = scalar_select %p30, 0, %s29
      %s32 = sadd.s32 1, %s21
      %s33 = scalar_select %p30, %s32, %s21
      %p34 = scmp.ge.s32.totalorder %s33, 1
      %s35 = scalar_select %p34, 0, %s33
      %s36 = sadd.s32 1, %s20
      %s37 = scalar_select %p34, %s36, %s20
      %p38 = scmp.ge.s32.totalorder %s37, 2
      %s39 = scalar_select %p38, 0, %s37
      %s40 = ssub.s32 %s20, %s39
      %s41 = ssub.s32 %s22, %s31
      %s42 = sor.u32 %s40, %s41
      %p43 = scmp.eq.s32.totalorder %s42, 0
      %s45 = sadd.s32 %s44, 1
      %s46 = scalar_select %p43, %s44, %s45
      %p49 = pneg %p43
      %p50 = scmp.eq.s32.totalorder %s13, 3
      %p51 = por %p49, %p50
      %p52 = scmp.ne.s32.totalorder %s44, %s47
      %p53 = scmp.eq.s32.totalorder %s13, 0
      %p54 = por %p52, %p53
      %p55 = scmp.ne.s32.totalorder %s44, %s47
      %p56 = scmp.eq.s32.totalorder %s18, 3
      %p57 = por %p55, %p56
      %p58 = scmp.ne.s32.totalorder %s47, %s48
      %p59 = scmp.eq.s32.totalorder %s18, 0
      %p60 = por %p58, %p59
      %p61 = scmp.ne.s32.totalorder %s47, %s48
      %p62 = scmp.eq.s32.totalorder %s19, 3
      %p63 = por %p61, %p62
      %p65 = scmp.ne.s32.totalorder %s48, %s64
      %p66 = scmp.eq.s32.totalorder %s19, 0
      %p67 = por %p65, %p66
      %s68 = sadd.s32 %s22, 1
      %s69 = smul.u32 %s68, 4
      %s70 = sadd.s32 %s31, 1
      %s71 = smul.u32 %s70, 4
      %s72 = ssub.s32 %s20, %s39
      %s73 = ssub.s32 %s69, %s71
      %s74 = sor.u32 %s72, %s73
      %p75 = scmp.eq.s32.totalorder %s74, 0
      %s77 = sadd.s32 %s76, 1
      %s78 = scalar_select %p75, %s76, %s77
      %p81 = pneg %p75
      %p82 = scmp.eq.s32.totalorder %s13, 3
      %p83 = por %p81, %p82
      %p84 = scmp.ne.s32.totalorder %s76, %s79
      %p85 = scmp.eq.s32.totalorder %s13, 0
      %p86 = por %p84, %p85
      %p87 = scmp.ne.s32.totalorder %s76, %s79
      %p88 = scmp.eq.s32.totalorder %s18, 3
      %p89 = por %p87, %p88
      %p90 = scmp.ne.s32.totalorder %s79, %s80
      %p91 = scmp.eq.s32.totalorder %s18, 0
      %p92 = por %p90, %p91
      %p93 = scmp.ne.s32.totalorder %s79, %s80
      %p94 = scmp.eq.s32.totalorder %s19, 3
      %p95 = por %p93, %p94
      %p97 = scmp.ne.s32.totalorder %s80, %s96
      %p98 = scmp.eq.s32.totalorder %s19, 0
      %p99 = por %p97, %p98
      %s100 = ssub.s32 %s21, %s35
      %p101 = scmp.eq.s32.totalorder %s100, 0
      %s103 = sadd.s32 %s102, 1
      %s104 = scalar_select %p101, %s102, %s103
      %p107 = pneg %p101
      %p108 = scmp.eq.s32.totalorder %s13, 3
      %p109 = por %p107, %p108
      %p110 = scmp.ne.s32.totalorder %s102, %s105
      %p111 = scmp.eq.s32.totalorder %s13, 0
      %p112 = por %p110, %p111
      %p113 = scmp.ne.s32.totalorder %s102, %s105
      %p114 = scmp.eq.s32.totalorder %s18, 3
      %p115 = por %p113, %p114
      %p116 = scmp.ne.s32.totalorder %s105, %s106
      %p117 = scmp.eq.s32.totalorder %s18, 0
      %p118 = por %p116, %p117
      %p119 = scmp.ne.s32.totalorder %s105, %s106
      %p120 = scmp.eq.s32.totalorder %s19, 3
      %p121 = por %p119, %p120
      %p123 = scmp.ne.s32.totalorder %s106, %s122
      %p124 = scmp.eq.s32.totalorder %s19, 0
      %p125 = por %p123, %p124
      %s126 = ssub.s32 %s21, %s35
      %p127 = scmp.eq.s32.totalorder %s126, 0
      %s129 = sadd.s32 %s128, 1
      %s130 = scalar_select %p127, %s128, %s129
      %p133 = pneg %p127
      %p134 = scmp.eq.s32.totalorder %s13, 3
      %p135 = por %p133, %p134
      %p136 = scmp.ne.s32.totalorder %s128, %s131
      %p137 = scmp.eq.s32.totalorder %s13, 0
      %p138 = por %p136, %p137
      %p139 = scmp.ne.s32.totalorder %s128, %s131
      %p140 = scmp.eq.s32.totalorder %s18, 3
      %p141 = por %p139, %p140
      %p142 = scmp.ne.s32.totalorder %s131, %s132
      %p143 = scmp.eq.s32.totalorder %s18, 0
      %p144 = por %p142, %p143
      %p145 = scmp.ne.s32.totalorder %s131, %s132
      %p146 = scmp.eq.s32.totalorder %s19, 3
      %p147 = por %p145, %p146
      %p149 = scmp.ne.s32.totalorder %s132, %s148
      %p150 = scmp.eq.s32.totalorder %s19, 0
      %p151 = por %p149, %p150
      %s152 = ssub.s32 %s20, %s39
      %s153 = ssub.s32 %s22, %s31
      %s154 = sor.u32 %s152, %s153
      %s155 = ssub.s32 %s21, %s35
      %s156 = sor.u32 %s154, %s155
      %p157 = scmp.eq.s32.totalorder %s156, 0
      %s159 = sadd.s32 %s158, 1
      %s160 = scalar_select %p157, %s158, %s159
      %p163 = pneg %p157
      %p164 = scmp.eq.s32.totalorder %s13, 3
      %p165 = por %p163, %p164
      %p166 = scmp.ne.s32.totalorder %s158, %s161
      %p167 = scmp.eq.s32.totalorder %s13, 0
      %p168 = por %p166, %p167
      %p169 = scmp.ne.s32.totalorder %s158, %s161
      %p170 = scmp.eq.s32.totalorder %s18, 3
      %p171 = por %p169, %p170
      %p172 = scmp.ne.s32.totalorder %s161, %s162
      %p173 = scmp.eq.s32.totalorder %s18, 0
      %p174 = por %p172, %p173
      %p175 = scmp.ne.s32.totalorder %s161, %s162
      %p176 = scmp.eq.s32.totalorder %s19, 3
      %p177 = por %p175, %p176
      %p179 = scmp.ne.s32.totalorder %s162, %s178
      %p180 = scmp.eq.s32.totalorder %s19, 0
      %p181 = por %p179, %p180
      %p182 = scmp.le.s32.totalorder 1, %s13
      %p183 = scmp.lt.s32.totalorder %s13, 5
      %p184 = pnand %p182, %p183
      %p185 = pneg %p184
      // Predicated region
      $region9: #{tpu_custom_call.1} parent=5 // pred_check
        _
      $region10: #{tpu_custom_call.1} parent=5 // pred_check_branch
        %187 = sbr.rel (%p184) target = $region12
      $region11: #{tpu_custom_call.1} parent=5 // pred_region
        %s188 = ssub.s32 %s13, 1
        // Predicated region
        $region13: #{tpu_custom_call.1} parent=11 // pred_check
          %p189 = pneg %p118
        $region14: #{tpu_custom_call.1} parent=11 // pred_check_branch
          %191 = sbr.rel (%p189) target = $region16
        $region15: #{tpu_custom_call.1} parent=11 // pred_region
          %p192 = scmp.lt.s32.totalorder %s24, 0
          %s193 = scalar_select %p192, %s24, 0
          %s194 = smul.addr %s193, 4
          %s195 = scalar_lea.vmem %s2, %s194
        $region16: #{tpu_custom_call.1} parent=11 // pred_fallthru
          _
        // Predicated region
        $region17: #{tpu_custom_call.1} parent=11 // pred_check
          %p196 = pneg %p144
        $region18: #{tpu_custom_call.1} parent=11 // pred_check_branch
          %198 = sbr.rel (%p196) target = $region20
        $region19: #{tpu_custom_call.1} parent=11 // pred_region
          %p199 = scmp.lt.s32.totalorder %s24, 0
          %s200 = scalar_select %p199, %s24, 0
          %s201 = scalar_lea.vmem %s3, %s200
        $region20: #{tpu_custom_call.1} parent=11 // pred_fallthru
          _
      $region12: #{tpu_custom_call.1} parent=5 // pred_fallthru
        _
      %p202 = scmp.lt.s32.totalorder %s13, 4
      // Predicated region
      $region21: #{tpu_custom_call.1} parent=5 // pred_check
        %p203 = pneg %p202
      $region22: #{tpu_custom_call.1} parent=5 // pred_check_branch
        %205 = sbr.rel (%p203) target = $region24
      $region23: #{tpu_custom_call.1} parent=5 // pred_region
        // Predicated region
        $region25: #{tpu_custom_call.1} parent=23 // pred_check
          %p206 = pneg %p54
        $region26: #{tpu_custom_call.1} parent=23 // pred_check_branch
          %208 = sbr.rel (%p206) target = $region28
        $region27: #{tpu_custom_call.1} parent=23 // pred_region
          %s209 = smul.u32 8, %s22
          %s210 = ssub.s32 18, %s209
          %p211 = scmp.lt.s32.totalorder %s210, 8
          %s212 = scalar_select %p211, %s210, 8
          %s213 = smul.u32 64, %s212
          %s214 = smul.u32 %s213, 3
          %p215 = scmp.lt.s32.totalorder %s20, 1
          %s216 = scalar_select %p215, %s20, 1
          %p217 = scmp.lt.s32.totalorder %s209, 17
          %s218 = scalar_select %p217, %s209, 17
          %s219 = smul.addr %s218, 3
          %s220 = smul.addr %s216, 54
          %s221 = sadd.s32 %s219, %s220
          %s222 = smul.addr %s221, 4
          %s223 = scalar_lea.vmem %s0, %s222
          %s224 = smul.u32 8, %s22
          %s225 = ssub.s32 18, %s224
          %p226 = scmp.lt.s32.totalorder %s225, 8
          %s227 = scalar_select %p226, %s225, 8
          %s228 = smul.u32 64, %s227
          %s229 = smul.u32 %s228, 3
        $region28: #{tpu_custom_call.1} parent=23 // pred_fallthru
          _
        // Predicated region
        $region29: #{tpu_custom_call.1} parent=23 // pred_check
          %p230 = pneg %p86
        $region30: #{tpu_custom_call.1} parent=23 // pred_check_branch
          %232 = sbr.rel (%p230) target = $region32
        $region31: #{tpu_custom_call.1} parent=23 // pred_region
          %s233 = sadd.s32 %s22, 1
          %s234 = smul.u32 %s233, 4
          %s235 = smul.u32 2, %s234
          %p236 = scmp.lt.s32.totalorder %s20, 1
          %s237 = scalar_select %p236, %s20, 1
          %p238 = scmp.lt.s32.totalorder %s235, 17
          %s239 = scalar_select %p238, %s235, 17
          %s240 = smul.addr %s239, 3
          %s241 = smul.addr %s237, 54
          %s242 = sadd.s32 %s240, %s241
          %s243 = smul.addr %s242, 4
          %s244 = scalar_lea.vmem %s1, %s243
          %s245 = sadd.s32 %s22, 1
          %s246 = smul.u32 %s245, 4
          %s247 = smul.u32 2, %s246
        $region32: #{tpu_custom_call.1} parent=23 // pred_fallthru
          _
      $region24: #{tpu_custom_call.1} parent=5 // pred_fallthru
        _
      %p248 = scmp.le.s32.totalorder 1, %s13
      %p249 = scmp.lt.s32.totalorder %s13, 5
      %p250 = pnand %p248, %p249
      %p251 = pneg %p250
      // Predicated region
      $region33: #{tpu_custom_call.1} parent=5 // pred_check
        _
      $region34: #{tpu_custom_call.1} parent=5 // pred_check_branch
        %253 = sbr.rel (%p250) target = $region36
      $region35: #{tpu_custom_call.1} parent=5 // pred_region
        %s254 = ssub.s32 %s13, 1
        %s255 = smul.u32 8, %s25
        %s256 = ssub.s32 18, %s255
        %p257 = scmp.lt.s32.totalorder %s256, 8
        %s258 = scalar_select %p257, %s256, 8
        %s259 = smul.u32 64, %s258
        %s260 = smul.u32 %s259, 3
        %p261 = scmp.lt.s32.totalorder %s23, 1
        %s262 = scalar_select %p261, %s23, 1
        %p263 = scmp.lt.s32.totalorder %s255, 17
        %s264 = scalar_select %p263, %s255, 17
        %s265 = smul.addr %s264, 3
        %s266 = smul.addr %s262, 54
        %s267 = sadd.s32 %s265, %s266
        %s268 = smul.addr %s267, 4
        %s269 = scalar_lea.vmem %s0, %s268
        %p270 = pneg %p60
        %p271 = pneg %p57
        %s272 = sadd.s32 %s25, 1
        %s273 = smul.u32 %s272, 4
        %s274 = smul.u32 2, %s273
        %p275 = scmp.lt.s32.totalorder %s23, 1
        %s276 = scalar_select %p275, %s23, 1
        %p277 = scmp.lt.s32.totalorder %s274, 17
        %s278 = scalar_select %p277, %s274, 17
        %s279 = smul.addr %s278, 3
        %s280 = smul.addr %s276, 54
        %s281 = sadd.s32 %s279, %s280
        %s282 = smul.addr %s281, 4
        %s283 = scalar_lea.vmem %s1, %s282
        %p284 = pneg %p92
        %p285 = pneg %p89
        %p286 = scmp.lt.s32.totalorder %s24, 0
        %s287 = scalar_select %p286, %s24, 0
        %s288 = smul.addr %s287, 4
        %s289 = scalar_lea.vmem %s2, %s288
        %p290 = pneg %p118
        %p291 = pneg %p115
        %p292 = scmp.lt.s32.totalorder %s24, 0
        %s293 = scalar_select %p292, %s24, 0
        %s294 = scalar_lea.vmem %s3, %s293
        %p295 = pneg %p144
        %p296 = pneg %p141
        %p297 = pneg %p174
        %p298 = pneg %p171
        %s299 = sand.u32 %s161, 1
        %s300 = scalar_lea.sflag [#allocation3], %s299
        %s301 = sand.u32 %s161, 1
        %s302 = smul.addr %s301, 128
        %s303 = scalar_lea.vmem [#allocation2], %s302
        %s304 = smul.u32 8, %s25
        %s305 = ssub.s32 18, %s304
        %p306 = scmp.lt.s32.totalorder %s305, 8
        %s307 = scalar_select %p306, %s305, 8
        %s308 = smul.u32 64, %s307
        %s309 = smul.u32 %s308, 3
        %p310 = scmp.lt.s32.totalorder %s23, 1
        %s311 = scalar_select %p310, %s23, 1
        %p312 = scmp.lt.s32.totalorder %s304, 17
        %s313 = scalar_select %p312, %s304, 17
        %s314 = smul.addr %s313, 3
        %s315 = smul.addr %s311, 54
        %s316 = sadd.s32 %s314, %s315
        %s317 = smul.addr %s316, 4
        %s318 = scalar_lea.vmem %s0, %s317
        %s319 = smul.u32 8, %s25
        %s320 = ssub.s32 18, %s319
        %p321 = scmp.lt.s32.totalorder %s320, 8
        %s322 = scalar_select %p321, %s320, 8
        %s323 = smul.u32 64, %s322
        %s324 = smul.u32 %s323, 3
        %s325 = sadd.s32 %s25, 1
        %s326 = smul.u32 %s325, 4
        %s327 = smul.u32 2, %s326
        %p328 = scmp.lt.s32.totalorder %s23, 1
        %s329 = scalar_select %p328, %s23, 1
        %p330 = scmp.lt.s32.totalorder %s327, 17
        %s331 = scalar_select %p330, %s327, 17
        %s332 = smul.addr %s331, 3
        %s333 = smul.addr %s329, 54
        %s334 = sadd.s32 %s332, %s333
        %s335 = smul.addr %s334, 4
        %s336 = scalar_lea.vmem %s1, %s335
        %s337 = sadd.s32 %s25, 1
        %s338 = smul.u32 %s337, 4
        %s339 = smul.u32 2, %s338
        %p340 = scmp.lt.s32.totalorder %s24, 0
        %s341 = scalar_select %p340, %s24, 0
        %s342 = smul.addr %s341, 4
        %s343 = scalar_lea.vmem %s2, %s342
        %p344 = scmp.lt.s32.totalorder %s24, 0
        %s345 = scalar_select %p344, %s24, 0
        %s346 = scalar_lea.vmem %s3, %s345
        %s347 = smul.u32 16, %s25
        %v349 = vld [vmem:[%s318] sm:$0xf]
        %v350 = vld [vmem:[%s318 + $0x4] sm:$0xf]
        %v351 = vld [vmem:[%s318 + $0x8] sm:$0x1]
        %v352 = vld [vmem:[%s318 + $0xc] sm:$0xf]
        %v353 = vld [vmem:[%s318 + $0x10] sm:$0xf]
        %v354 = vld [vmem:[%s318 + $0x14] sm:$0x1]
        %v355 = vld [vmem:[%s318 + $0x18] sm:$0xf]
        %v356 = vld [vmem:[%s318 + $0x1c] sm:$0xf]
        %v357 = vld [vmem:[%s318 + $0x20] sm:$0x1]
        %v358 = vld [vmem:[%s318 + $0x24] sm:$0xf]
        %v359 = vld [vmem:[%s318 + $0x28] sm:$0xf]
        %v360 = vld [vmem:[%s318 + $0x2c] sm:$0x1]
        %v361 = vld [vmem:[%s318 + $0x30] sm:$0xf]
        %v362 = vld [vmem:[%s318 + $0x34] sm:$0xf]
        %v363 = vld [vmem:[%s318 + $0x38] sm:$0x1]
        %v364 = vld [vmem:[%s318 + $0x3c] sm:$0xf]
        %v365 = vld [vmem:[%s318 + $0x40] sm:$0xf]
        %v366 = vld [vmem:[%s318 + $0x44] sm:$0x1]
        %v367 = vld [vmem:[%s318 + $0x48] sm:$0xf]
        %v368 = vld [vmem:[%s318 + $0x4c] sm:$0xf]
        %v369 = vld [vmem:[%s318 + $0x50] sm:$0x1]
        %v370 = vld [vmem:[%s318 + $0x54] sm:$0xf]
        %v371 = vld [vmem:[%s318 + $0x58] sm:$0xf]
        %v372 = vld [vmem:[%s318 + $0x5c] sm:$0x1]
        %v373 = vld [vmem:[%s336] sm:$0xf]
        %v374 = vld [vmem:[%s336 + $0x4] sm:$0xf]
        %v375 = vld [vmem:[%s336 + $0x8] sm:$0x1]
        %v376 = vld [vmem:[%s336 + $0xc] sm:$0xf]
        %v377 = vld [vmem:[%s336 + $0x10] sm:$0xf]
        %v378 = vld [vmem:[%s336 + $0x14] sm:$0x1]
        %v399 = vunpack.c.l.b16 %v349
        %v400 = vunpack.c.l.b16 %v350
        %v401 = vunpack.c.l.b16 %v352
        %v402 = vunpack.c.l.b16 %v353
        %v403 = vunpack.c.l.b16 %v355
        %v404 = vunpack.c.l.b16 %v356
        %v405 = vunpack.c.l.b16 %v358
        %v406 = vunpack.c.l.b16 %v359
        %v407 = vunpack.c.l.b16 %v361
        %v408 = vunpack.c.l.b16 %v362
        %v409 = vunpack.c.l.b16 %v364
        %v410 = vunpack.c.l.b16 %v365
        %v411 = vunpack.c.l.b16 %v367
        %v412 = vunpack.c.l.b16 %v368
        %v413 = vunpack.c.l.b16 %v370
        %v414 = vunpack.c.l.b16 %v371
        %v415 = vunpack.c.l.b16 %v373
        %v416 = vunpack.c.l.b16 %v374
        %v417 = vunpack.c.l.b16 %v376
        %v418 = vunpack.c.l.b16 %v377
        %v419 = vpack.c.b16 %v400, %v399
        %v420 = vpack.c.b16 %v402, %v401
        %v421 = vpack.c.b16 %v404, %v403
        %v422 = vpack.c.b16 %v406, %v405
        %v423 = vpack.c.b16 %v408, %v407
        %v424 = vpack.c.b16 %v410, %v409
        %v425 = vpack.c.b16 %v412, %v411
        %v426 = vpack.c.b16 %v414, %v413
        %v427 = vpack.c.b16 %v416, %v415
        %v428 = vpack.c.b16 %v418, %v417
        %v439 = vunpack.c.l.b16 %v351
        %v440 = vunpack.c.l.b16 %v354
        %v441 = vunpack.c.l.b16 %v357
        %v442 = vunpack.c.l.b16 %v360
        %v443 = vunpack.c.l.b16 %v363
        %v444 = vunpack.c.l.b16 %v366
        %v445 = vunpack.c.l.b16 %v369
        %v446 = vunpack.c.l.b16 %v372
        %v447 = vunpack.c.l.b16 %v375
        %v448 = vunpack.c.l.b16 %v378
        %v449 = vpack.c.b16 %v439, %v439
        %v450 = vpack.c.b16 %v440, %v440
        %v451 = vpack.c.b16 %v441, %v441
        %v452 = vpack.c.b16 %v442, %v442
        %v453 = vpack.c.b16 %v443, %v443
        %v454 = vpack.c.b16 %v444, %v444
        %v455 = vpack.c.b16 %v445, %v445
        %v456 = vpack.c.b16 %v446, %v446
        %v457 = vpack.c.b16 %v447, %v447
        %v458 = vpack.c.b16 %v448, %v448
        %vm459 = vsmask.f32 7424
        %v461 = vshrl.u32 %v419, 16
        %v463 = vshll.u32 %v419, 16
        %v465 = vrot.slane %v463, 1
        %v466 = vor.u32 %v461, %v465
        %v468 = vshll.u32 %v449, 16
        %v470 = vrot.slane %v468, 1
        %v471 = vsel %vm459, %v466, %v470
        %v473 = vshrl.u32 %v420, 16
        %v475 = vshll.u32 %v420, 16
        %v477 = vrot.slane %v475, 1
        %v478 = vor.u32 %v473, %v477
        %v480 = vshll.u32 %v450, 16
        %v482 = vrot.slane %v480, 1
        %v483 = vsel %vm459, %v478, %v482
        %v485 = vshrl.u32 %v421, 16
        %v487 = vshll.u32 %v421, 16
        %v489 = vrot.slane %v487, 1
        %v490 = vor.u32 %v485, %v489
        %v492 = vshll.u32 %v451, 16
        %v494 = vrot.slane %v492, 1
        %v495 = vsel %vm459, %v490, %v494
        %v497 = vshrl.u32 %v422, 16
        %v499 = vshll.u32 %v422, 16
        %v501 = vrot.slane %v499, 1
        %v502 = vor.u32 %v497, %v501
        %v504 = vshll.u32 %v452, 16
        %v506 = vrot.slane %v504, 1
        %v507 = vsel %vm459, %v502, %v506
        %v509 = vshrl.u32 %v423, 16
        %v511 = vshll.u32 %v423, 16
        %v513 = vrot.slane %v511, 1
        %v514 = vor.u32 %v509, %v513
        %v516 = vshll.u32 %v453, 16
        %v518 = vrot.slane %v516, 1
        %v519 = vsel %vm459, %v514, %v518
        %v521 = vshrl.u32 %v424, 16
        %v523 = vshll.u32 %v424, 16
        %v525 = vrot.slane %v523, 1
        %v526 = vor.u32 %v521, %v525
        %v528 = vshll.u32 %v454, 16
        %v530 = vrot.slane %v528, 1
        %v531 = vsel %vm459, %v526, %v530
        %v533 = vshrl.u32 %v425, 16
        %v535 = vshll.u32 %v425, 16
        %v537 = vrot.slane %v535, 1
        %v538 = vor.u32 %v533, %v537
        %v540 = vshll.u32 %v455, 16
        %v542 = vrot.slane %v540, 1
        %v543 = vsel %vm459, %v538, %v542
        %v545 = vshrl.u32 %v426, 16
        %v547 = vshll.u32 %v426, 16
        %v549 = vrot.slane %v547, 1
        %v550 = vor.u32 %v545, %v549
        %v552 = vshll.u32 %v456, 16
        %v554 = vrot.slane %v552, 1
        %v555 = vsel %vm459, %v550, %v554
        %v557 = vshrl.u32 %v427, 16
        %v559 = vshll.u32 %v427, 16
        %v561 = vrot.slane %v559, 1
        %v562 = vor.u32 %v557, %v561
        %v564 = vshll.u32 %v457, 16
        %v566 = vrot.slane %v564, 1
        %v567 = vsel %vm459, %v562, %v566
        %v569 = vshrl.u32 %v428, 16
        %v571 = vshll.u32 %v428, 16
        %v573 = vrot.slane %v571, 1
        %v574 = vor.u32 %v569, %v573
        %v576 = vshll.u32 %v458, 16
        %v578 = vrot.slane %v576, 1
        %v579 = vsel %vm459, %v574, %v578
        %580 = vrot.lane.b32.xlu0 %v471, 4
        %v581 = vpop.permute.xlu0 %580
        %582 = vrot.lane.b32.xlu0 %v483, 4
        %v583 = vpop.permute.xlu0 %582
        %584 = vrot.lane.b32.xlu0 %v495, 4
        %v585 = vpop.permute.xlu0 %584
        %586 = vrot.lane.b32.xlu0 %v507, 4
        %v587 = vpop.permute.xlu0 %586
        %588 = vrot.lane.b32.xlu0 %v519, 4
        %v589 = vpop.permute.xlu0 %588
        %590 = vrot.lane.b32.xlu0 %v531, 4
        %v591 = vpop.permute.xlu0 %590
        %592 = vrot.lane.b32.xlu0 %v543, 4
        %v593 = vpop.permute.xlu0 %592
        %594 = vrot.lane.b32.xlu0 %v555, 4
        %v595 = vpop.permute.xlu0 %594
        %596 = vrot.lane.b32.xlu0 %v567, 4
        %v597 = vpop.permute.xlu0 %596
        %598 = vrot.lane.b32.xlu0 %v579, 4
        %v599 = vpop.permute.xlu0 %598
        %vm600 = vcmask 1046528
        %v601 = vrot.slane %v419, 1
        %v602 = vrot.slane %v449, 1
        %v603 = vsel %vm600, %v601, %v602
        %v604 = vrot.slane %v420, 1
        %v605 = vrot.slane %v450, 1
        %v606 = vsel %vm600, %v604, %v605
        %v607 = vrot.slane %v421, 1
        %v608 = vrot.slane %v451, 1
        %v609 = vsel %vm600, %v607, %v608
        %v610 = vrot.slane %v422, 1
        %v611 = vrot.slane %v452, 1
        %v612 = vsel %vm600, %v610, %v611
        %v613 = vrot.slane %v423, 1
        %v614 = vrot.slane %v453, 1
        %v615 = vsel %vm600, %v613, %v614
        %v616 = vrot.slane %v424, 1
        %v617 = vrot.slane %v454, 1
        %v618 = vsel %vm600, %v616, %v617
        %v619 = vrot.slane %v425, 1
        %v620 = vrot.slane %v455, 1
        %v621 = vsel %vm600, %v619, %v620
        %v622 = vrot.slane %v426, 1
        %v623 = vrot.slane %v456, 1
        %v624 = vsel %vm600, %v622, %v623
        %v625 = vrot.slane %v427, 1
        %v626 = vrot.slane %v457, 1
        %v627 = vsel %vm600, %v625, %v626
        %v628 = vrot.slane %v428, 1
        %v629 = vrot.slane %v458, 1
        %v630 = vsel %vm600, %v628, %v629
        %631 = vrot.lane.b32.xlu0 %v603, 8
        %v632 = vpop.permute.xlu0 %631
        %633 = vrot.lane.b32.xlu0 %v606, 8
        %v634 = vpop.permute.xlu0 %633
        %635 = vrot.lane.b32.xlu0 %v609, 8
        %v636 = vpop.permute.xlu0 %635
        %637 = vrot.lane.b32.xlu0 %v612, 8
        %v638 = vpop.permute.xlu0 %637
        %639 = vrot.lane.b32.xlu0 %v615, 8
        %v640 = vpop.permute.xlu0 %639
        %641 = vrot.lane.b32.xlu0 %v618, 8
        %v642 = vpop.permute.xlu0 %641
        %643 = vrot.lane.b32.xlu0 %v621, 8
        %v644 = vpop.permute.xlu0 %643
        %645 = vrot.lane.b32.xlu0 %v624, 8
        %v646 = vpop.permute.xlu0 %645
        %647 = vrot.lane.b32.xlu0 %v627, 8
        %v648 = vpop.permute.xlu0 %647
        %649 = vrot.lane.b32.xlu0 %v630, 8
        %v650 = vpop.permute.xlu0 %649
        %vm651 = vcmask 31744
        %v653 = vsel %vm651, %v419, %v581
        %v655 = vsel %vm651, %v420, %v583
        %v657 = vsel %vm651, %v421, %v585
        %v659 = vsel %vm651, %v422, %v587
        %v661 = vsel %vm651, %v423, %v589
        %v663 = vsel %vm651, %v424, %v591
        %v665 = vsel %vm651, %v425, %v593
        %v667 = vsel %vm651, %v426, %v595
        %v669 = vsel %vm651, %v427, %v597
        %v671 = vsel %vm651, %v428, %v599
        %vm672 = vcmask 64512
        %v674 = vsel %vm672, %v653, %v632
        %v676 = vsel %vm672, %v655, %v634
        %v678 = vsel %vm672, %v657, %v636
        %v680 = vsel %vm672, %v659, %v638
        %v682 = vsel %vm672, %v661, %v640
        %v684 = vsel %vm672, %v663, %v642
        %v686 = vsel %vm672, %v665, %v644
        %v688 = vsel %vm672, %v667, %v646
        %v690 = vsel %vm672, %v669, %v648
        %v692 = vsel %vm672, %v671, %v650
        %v693 = vld [vmem:[%s343] sm:$0xf]
        %v694 = vld [vmem:[%s343 + $0x4] sm:$0x3]
        %s695 = scalar_lea.vmem %s343, 8
        %v696 = vld [vmem:[%s695] sm:$0xf]
        %v697 = vld [vmem:[%s695 + $0x4] sm:$0x3]
        %v700 = vunpack.c.l.b16 %v696
        %v701 = vunpack.c.l.b16 %v697
        %v702 = vpack.c.b16 %v701, %v700
        %vm703 = vcmask 97280
        %v704 = vsel %vm703, %v676, 0
        %v706 = vsel %vm703, %v678, 0
        %v708 = vsel %vm703, %v680, 0
        %v710 = vsel %vm703, %v682, 0
        %v712 = vsel %vm703, %v684, 0
        %v714 = vsel %vm703, %v686, 0
        %v716 = vsel %vm703, %v688, 0
        %v718 = vsel %vm703, %v690, 0
        %vm720 = vcmask 1045504
        %v722 = vsel %vm720, %v702, 0
        %724 = vmatprep.subr.bf16.mxu0 0
        %725 = vmatpush1.bf16.msra.mxu0 0
        %726 = vmatprep.subr.bf16.mxu0 0
        %727 = vmatpush1.bf16.msra.mxu0 0
        %728 = vmatprep.subr.bf16.mxu0 0
        %729 = vmatpush1.bf16.msra.mxu0 0
        %730 = vmatprep.subr.bf16.mxu0 0
        %731 = vmatpush1.bf16.msra.mxu0 0
        %732 = vmatprep.subr.bf16.mxu0 0
        %733 = vmatpush1.bf16.msra.mxu0 0
        %734 = vmatprep.subr.bf16.mxu0 0
        %735 = vmatpush1.bf16.msra.mxu0 0
        %736 = vmatprep.subr.bf16.mxu0 0
        %737 = vmatpush1.bf16.msra.mxu0 0
        %738 = vmatprep.subr.bf16.mxu0 0
        %739 = vmatpush1.bf16.msra.mxu0 %v722
        %740 = vmatprep.subr.bf16.mxu0 0
        %741 = vmatpush2.bf16.msra.mxu0 0
        %742 = vmatprep.subr.bf16.mxu0 0
        %743 = vmatpush2.bf16.msra.mxu0 0
        %744 = vmatprep.subr.bf16.mxu0 0
        %745 = vmatpush2.bf16.msra.mxu0 0
        %746 = vmatprep.subr.bf16.mxu0 0
        %747 = vmatpush2.bf16.msra.mxu0 0
        %748 = vmatprep.subr.bf16.mxu0 0
        %749 = vmatpush2.bf16.msra.mxu0 0
        %750 = vmatprep.subr.bf16.mxu0 0
        %751 = vmatpush2.bf16.msra.mxu0 0
        %752 = vmatprep.subr.bf16.mxu0 0
        %753 = vmatpush2.bf16.msra.mxu0 0
        %754 = vmatprep.subr.bf16.mxu0 0
        %755 = vmatpush2.bf16.msra.mxu0 0
        %756 = vmatprep.mubr.bf16.mxu0 0
        %757 = vmatmul.mubr.bf16.gmra.mxu0 %v704
        %v758 = vpop.f32.mrf.mxu0
        %v759 = vadd.f32 0.0, %v758
        %v760 = vpop.f32.mrf.mxu0
        %v761 = vpop.f32.mrf.mxu0
        %v762 = vadd.f32 0.0, %v761
        %v763 = vpop.f32.mrf.mxu0
        %764 = vmatprep.mubr.bf16.mxu0 0
        %765 = vmatmul.mubr.bf16.gmra.mxu0 %v706
        %v766 = vpop.f32.mrf.mxu0
        %v767 = vadd.f32 0.0, %v766
        %v768 = vpop.f32.mrf.mxu0
        %v769 = vpop.f32.mrf.mxu0
        %v770 = vadd.f32 0.0, %v769
        %v771 = vpop.f32.mrf.mxu0
        %772 = vmatprep.mubr.bf16.mxu0 0
        %773 = vmatmul.mubr.bf16.gmra.mxu0 %v708
        %v774 = vpop.f32.mrf.mxu0
        %v775 = vadd.f32 0.0, %v774
        %v776 = vpop.f32.mrf.mxu0
        %v777 = vpop.f32.mrf.mxu0
        %v778 = vadd.f32 0.0, %v777
        %v779 = vpop.f32.mrf.mxu0
        %780 = vmatprep.mubr.bf16.mxu0 0
        %781 = vmatmul.mubr.bf16.gmra.mxu0 %v710
        %v782 = vpop.f32.mrf.mxu0
        %v783 = vadd.f32 0.0, %v782
        %v784 = vpop.f32.mrf.mxu0
        %v785 = vpop.f32.mrf.mxu0
        %v786 = vadd.f32 0.0, %v785
        %v787 = vpop.f32.mrf.mxu0
        %788 = vmatprep.mubr.bf16.mxu0 0
        %789 = vmatmul.mubr.bf16.gmra.mxu0 %v712
        %v790 = vpop.f32.mrf.mxu0
        %v791 = vadd.f32 0.0, %v790
        %v792 = vpop.f32.mrf.mxu0
        %v793 = vpop.f32.mrf.mxu0
        %v794 = vadd.f32 0.0, %v793
        %v795 = vpop.f32.mrf.mxu0
        %796 = vmatprep.mubr.bf16.mxu0 0
        %797 = vmatmul.mubr.bf16.gmra.mxu0 %v714
        %v798 = vpop.f32.mrf.mxu0
        %v799 = vadd.f32 0.0, %v798
        %v800 = vpop.f32.mrf.mxu0
        %v801 = vpop.f32.mrf.mxu0
        %v802 = vadd.f32 0.0, %v801
        %v803 = vpop.f32.mrf.mxu0
        %804 = vmatprep.mubr.bf16.mxu0 0
        %805 = vmatmul.mubr.bf16.gmra.mxu0 %v716
        %v806 = vpop.f32.mrf.mxu0
        %v807 = vadd.f32 0.0, %v806
        %v808 = vpop.f32.mrf.mxu0
        %v809 = vpop.f32.mrf.mxu0
        %v810 = vadd.f32 0.0, %v809
        %v811 = vpop.f32.mrf.mxu0
        %812 = vmatprep.mubr.bf16.mxu0 0
        %813 = vmatmul.mubr.bf16.gmra.mxu0 %v718
        %v814 = vpop.f32.mrf.mxu0
        %v815 = vadd.f32 0.0, %v814
        %v816 = vpop.f32.mrf.mxu0
        %v817 = vpop.f32.mrf.mxu0
        %v818 = vadd.f32 0.0, %v817
        %v819 = vpop.f32.mrf.mxu0
        %820 = vdwg.mxu0
        %v823 = vunpack.c.l.b16 %v693
        %v824 = vunpack.c.l.b16 %v694
        %v825 = vpack.c.b16 %v824, %v823
        %v826 = vsel %vm703, %v674, 0
        %v829 = vsel %vm720, %v825, 0
        %831 = vmatprep.subr.bf16.mxu0 0
        %832 = vmatpush1.bf16.msra.mxu0 0
        %833 = vmatprep.subr.bf16.mxu0 0
        %834 = vmatpush1.bf16.msra.mxu0 0
        %835 = vmatprep.subr.bf16.mxu0 0
        %836 = vmatpush1.bf16.msra.mxu0 0
        %837 = vmatprep.subr.bf16.mxu0 0
        %838 = vmatpush1.bf16.msra.mxu0 0
        %839 = vmatprep.subr.bf16.mxu0 0
        %840 = vmatpush1.bf16.msra.mxu0 0
        %841 = vmatprep.subr.bf16.mxu0 0
        %842 = vmatpush1.bf16.msra.mxu0 0
        %843 = vmatprep.subr.bf16.mxu0 0
        %844 = vmatpush1.bf16.msra.mxu0 0
        %845 = vmatprep.subr.bf16.mxu0 0
        %846 = vmatpush1.bf16.msra.mxu0 %v829
        %847 = vmatprep.subr.bf16.mxu0 0
        %848 = vmatpush2.bf16.msra.mxu0 0
        %849 = vmatprep.subr.bf16.mxu0 0
        %850 = vmatpush2.bf16.msra.mxu0 0
        %851 = vmatprep.subr.bf16.mxu0 0
        %852 = vmatpush2.bf16.msra.mxu0 0
        %853 = vmatprep.subr.bf16.mxu0 0
        %854 = vmatpush2.bf16.msra.mxu0 0
        %855 = vmatprep.subr.bf16.mxu0 0
        %856 = vmatpush2.bf16.msra.mxu0 0
        %857 = vmatprep.subr.bf16.mxu0 0
        %858 = vmatpush2.bf16.msra.mxu0 0
        %859 = vmatprep.subr.bf16.mxu0 0
        %860 = vmatpush2.bf16.msra.mxu0 0
        %861 = vmatprep.subr.bf16.mxu0 0
        %862 = vmatpush2.bf16.msra.mxu0 0
        %863 = vmatprep.mubr.bf16.mxu0 0
        %864 = vmatmul.mubr.bf16.gmra.mxu0 %v826
        %v865 = vpop.f32.mrf.mxu0
        %v866 = vadd.f32 %v759, %v865
        %v867 = vpop.f32.mrf.mxu0
        %v868 = vpop.f32.mrf.mxu0
        %v869 = vadd.f32 %v762, %v868
        %v870 = vpop.f32.mrf.mxu0
        %871 = vmatprep.mubr.bf16.mxu0 0
        %872 = vmatmul.mubr.bf16.gmra.mxu0 %v704
        %v873 = vpop.f32.mrf.mxu0
        %v874 = vadd.f32 %v767, %v873
        %v875 = vpop.f32.mrf.mxu0
        %v876 = vpop.f32.mrf.mxu0
        %v877 = vadd.f32 %v770, %v876
        %v878 = vpop.f32.mrf.mxu0
        %879 = vmatprep.mubr.bf16.mxu0 0
        %880 = vmatmul.mubr.bf16.gmra.mxu0 %v706
        %v881 = vpop.f32.mrf.mxu0
        %v882 = vadd.f32 %v775, %v881
        %v883 = vpop.f32.mrf.mxu0
        %v884 = vpop.f32.mrf.mxu0
        %v885 = vadd.f32 %v778, %v884
        %v886 = vpop.f32.mrf.mxu0
        %887 = vmatprep.mubr.bf16.mxu0 0
        %888 = vmatmul.mubr.bf16.gmra.mxu0 %v708
        %v889 = vpop.f32.mrf.mxu0
        %v890 = vadd.f32 %v783, %v889
        %v891 = vpop.f32.mrf.mxu0
        %v892 = vpop.f32.mrf.mxu0
        %v893 = vadd.f32 %v786, %v892
        %v894 = vpop.f32.mrf.mxu0
        %895 = vmatprep.mubr.bf16.mxu0 0
        %896 = vmatmul.mubr.bf16.gmra.mxu0 %v710
        %v897 = vpop.f32.mrf.mxu0
        %v898 = vadd.f32 %v791, %v897
        %v899 = vpop.f32.mrf.mxu0
        %v900 = vpop.f32.mrf.mxu0
        %v901 = vadd.f32 %v794, %v900
        %v902 = vpop.f32.mrf.mxu0
        %903 = vmatprep.mubr.bf16.mxu0 0
        %904 = vmatmul.mubr.bf16.gmra.mxu0 %v712
        %v905 = vpop.f32.mrf.mxu0
        %v906 = vadd.f32 %v799, %v905
        %v907 = vpop.f32.mrf.mxu0
        %v908 = vpop.f32.mrf.mxu0
        %v909 = vadd.f32 %v802, %v908
        %v910 = vpop.f32.mrf.mxu0
        %911 = vmatprep.mubr.bf16.mxu0 0
        %912 = vmatmul.mubr.bf16.gmra.mxu0 %v714
        %v913 = vpop.f32.mrf.mxu0
        %v914 = vadd.f32 %v807, %v913
        %v915 = vpop.f32.mrf.mxu0
        %v916 = vpop.f32.mrf.mxu0
        %v917 = vadd.f32 %v810, %v916
        %v918 = vpop.f32.mrf.mxu0
        %919 = vmatprep.mubr.bf16.mxu0 0
        %920 = vmatmul.mubr.bf16.gmra.mxu0 %v716
        %v921 = vpop.f32.mrf.mxu0
        %v922 = vadd.f32 %v815, %v921
        %v923 = vpop.f32.mrf.mxu0
        %v924 = vpop.f32.mrf.mxu0
        %v925 = vadd.f32 %v818, %v924
        %v926 = vpop.f32.mrf.mxu0
        %927 = vdwg.mxu0
        %s928 = scalar_lea.vmem %s343, 16
        %v929 = vld [vmem:[%s928] sm:$0xf]
        %v930 = vld [vmem:[%s928 + $0x4] sm:$0x3]
        %v933 = vunpack.c.l.b16 %v929
        %v934 = vunpack.c.l.b16 %v930
        %v935 = vpack.c.b16 %v934, %v933
        %v936 = vsel %vm703, %v692, 0
        %v939 = vsel %vm720, %v935, 0
        %941 = vmatprep.subr.bf16.mxu0 0
        %942 = vmatpush1.bf16.msra.mxu0 0
        %943 = vmatprep.subr.bf16.mxu0 0
        %944 = vmatpush1.bf16.msra.mxu0 0
        %945 = vmatprep.subr.bf16.mxu0 0
        %946 = vmatpush1.bf16.msra.mxu0 0
        %947 = vmatprep.subr.bf16.mxu0 0
        %948 = vmatpush1.bf16.msra.mxu0 0
        %949 = vmatprep.subr.bf16.mxu0 0
        %950 = vmatpush1.bf16.msra.mxu0 0
        %951 = vmatprep.subr.bf16.mxu0 0
        %952 = vmatpush1.bf16.msra.mxu0 0
        %953 = vmatprep.subr.bf16.mxu0 0
        %954 = vmatpush1.bf16.msra.mxu0 0
        %955 = vmatprep.subr.bf16.mxu0 0
        %956 = vmatpush1.bf16.msra.mxu0 %v939
        %957 = vmatprep.subr.bf16.mxu0 0
        %958 = vmatpush2.bf16.msra.mxu0 0
        %959 = vmatprep.subr.bf16.mxu0 0
        %960 = vmatpush2.bf16.msra.mxu0 0
        %961 = vmatprep.subr.bf16.mxu0 0
        %962 = vmatpush2.bf16.msra.mxu0 0
        %963 = vmatprep.subr.bf16.mxu0 0
        %964 = vmatpush2.bf16.msra.mxu0 0
        %965 = vmatprep.subr.bf16.mxu0 0
        %966 = vmatpush2.bf16.msra.mxu0 0
        %967 = vmatprep.subr.bf16.mxu0 0
        %968 = vmatpush2.bf16.msra.mxu0 0
        %969 = vmatprep.subr.bf16.mxu0 0
        %970 = vmatpush2.bf16.msra.mxu0 0
        %971 = vmatprep.subr.bf16.mxu0 0
        %972 = vmatpush2.bf16.msra.mxu0 0
        %973 = vmatprep.mubr.bf16.mxu0 0
        %974 = vmatmul.mubr.bf16.gmra.mxu0 %v706
        %v975 = vpop.f32.mrf.mxu0
        %v976 = vadd.f32 0.0, %v975
        %v977 = vpop.f32.mrf.mxu0
        %v978 = vpop.f32.mrf.mxu0
        %v979 = vadd.f32 0.0, %v978
        %v980 = vpop.f32.mrf.mxu0
        %981 = vmatprep.mubr.bf16.mxu0 0
        %982 = vmatmul.mubr.bf16.gmra.mxu0 %v708
        %v983 = vpop.f32.mrf.mxu0
        %v984 = vadd.f32 0.0, %v983
        %v985 = vpop.f32.mrf.mxu0
        %v986 = vpop.f32.mrf.mxu0
        %v987 = vadd.f32 0.0, %v986
        %v988 = vpop.f32.mrf.mxu0
        %989 = vmatprep.mubr.bf16.mxu0 0
        %990 = vmatmul.mubr.bf16.gmra.mxu0 %v710
        %v991 = vpop.f32.mrf.mxu0
        %v992 = vadd.f32 0.0, %v991
        %v993 = vpop.f32.mrf.mxu0
        %v994 = vpop.f32.mrf.mxu0
        %v995 = vadd.f32 0.0, %v994
        %v996 = vpop.f32.mrf.mxu0
        %997 = vmatprep.mubr.bf16.mxu0 0
        %998 = vmatmul.mubr.bf16.gmra.mxu0 %v712
        %v999 = vpop.f32.mrf.mxu0
        %v1000 = vadd.f32 0.0, %v999
        %v1001 = vpop.f32.mrf.mxu0
        %v1002 = vpop.f32.mrf.mxu0
        %v1003 = vadd.f32 0.0, %v1002
        %v1004 = vpop.f32.mrf.mxu0
        %1005 = vmatprep.mubr.bf16.mxu0 0
        %1006 = vmatmul.mubr.bf16.gmra.mxu0 %v714
        %v1007 = vpop.f32.mrf.mxu0
        %v1008 = vadd.f32 0.0, %v1007
        %v1009 = vpop.f32.mrf.mxu0
        %v1010 = vpop.f32.mrf.mxu0
        %v1011 = vadd.f32 0.0, %v1010
        %v1012 = vpop.f32.mrf.mxu0
        %1013 = vmatprep.mubr.bf16.mxu0 0
        %1014 = vmatmul.mubr.bf16.gmra.mxu0 %v716
        %v1015 = vpop.f32.mrf.mxu0
        %v1016 = vadd.f32 0.0, %v1015
        %v1017 = vpop.f32.mrf.mxu0
        %v1018 = vpop.f32.mrf.mxu0
        %v1019 = vadd.f32 0.0, %v1018
        %v1020 = vpop.f32.mrf.mxu0
        %1021 = vmatprep.mubr.bf16.mxu0 0
        %1022 = vmatmul.mubr.bf16.gmra.mxu0 %v718
        %v1023 = vpop.f32.mrf.mxu0
        %v1024 = vadd.f32 0.0, %v1023
        %v1025 = vpop.f32.mrf.mxu0
        %v1026 = vpop.f32.mrf.mxu0
        %v1027 = vadd.f32 0.0, %v1026
        %v1028 = vpop.f32.mrf.mxu0
        %1029 = vmatprep.mubr.bf16.mxu0 0
        %1030 = vmatmul.mubr.bf16.gmra.mxu0 %v936
        %v1031 = vpop.f32.mrf.mxu0
        %v1032 = vadd.f32 0.0, %v1031
        %v1033 = vpop.f32.mrf.mxu0
        %v1034 = vpop.f32.mrf.mxu0
        %v1035 = vadd.f32 0.0, %v1034
        %v1036 = vpop.f32.mrf.mxu0
        %1037 = vdwg.mxu0
        %v1038 = vadd.f32 %v866, %v976
        %v1039 = vadd.f32 %v869, %v979
        %v1040 = vadd.f32 %v874, %v984
        %v1041 = vadd.f32 %v877, %v987
        %v1042 = vadd.f32 %v882, %v992
        %v1043 = vadd.f32 %v885, %v995
        %v1044 = vadd.f32 %v890, %v1000
        %v1045 = vadd.f32 %v893, %v1003
        %v1046 = vadd.f32 %v898, %v1008
        %v1047 = vadd.f32 %v901, %v1011
        %v1048 = vadd.f32 %v906, %v1016
        %v1049 = vadd.f32 %v909, %v1019
        %v1050 = vadd.f32 %v914, %v1024
        %v1051 = vadd.f32 %v917, %v1027
        %v1052 = vadd.f32 %v922, %v1032
        %v1053 = vadd.f32 %v925, %v1035
        %v1054 = vld [vmem:[%s346] sm:$0x1]
        %v1056 = vlaneseq
        %v1057 = vshrl.u32 %v1056, 7
        %v1058 = vsub.s32 0, %v1057
        %v1059 = vrot.slane %v1054, %v1058
        %v1061 = vadd.f32 %v1038, %v1059
        %v1062 = vadd.f32 %v1039, %v1059
        %v1063 = vadd.f32 %v1040, %v1059
        %v1064 = vadd.f32 %v1041, %v1059
        %v1065 = vadd.f32 %v1042, %v1059
        %v1066 = vadd.f32 %v1043, %v1059
        %v1067 = vadd.f32 %v1044, %v1059
        %v1068 = vadd.f32 %v1045, %v1059
        %v1069 = vadd.f32 %v1046, %v1059
        %v1070 = vadd.f32 %v1047, %v1059
        %v1071 = vadd.f32 %v1048, %v1059
        %v1072 = vadd.f32 %v1049, %v1059
        %v1073 = vadd.f32 %v1050, %v1059
        %v1074 = vadd.f32 %v1051, %v1059
        %v1075 = vadd.f32 %v1052, %v1059
        %v1076 = vadd.f32 %v1053, %v1059
        %v1077 = vsub.f32 0.0, %v1061
        %v1078 = vsub.f32 0.0, %v1062
        %v1079 = vsub.f32 0.0, %v1063
        %v1080 = vsub.f32 0.0, %v1064
        %v1081 = vsub.f32 0.0, %v1065
        %v1082 = vsub.f32 0.0, %v1066
        %v1083 = vsub.f32 0.0, %v1067
        %v1084 = vsub.f32 0.0, %v1068
        %v1085 = vsub.f32 0.0, %v1069
        %v1086 = vsub.f32 0.0, %v1070
        %v1087 = vsub.f32 0.0, %v1071
        %v1088 = vsub.f32 0.0, %v1072
        %v1089 = vsub.f32 0.0, %v1073
        %v1090 = vsub.f32 0.0, %v1074
        %v1091 = vsub.f32 0.0, %v1075
        %v1092 = vsub.f32 0.0, %v1076
        %v1093 = vmul.f32 %v1077, 1.442695
        %v1094 = vpow.pop %v1093
        %v1095 = vmul.f32 %v1078, 1.442695
        %v1096 = vpow.pop %v1095
        %v1097 = vmul.f32 %v1079, 1.442695
        %v1098 = vpow.pop %v1097
        %v1099 = vmul.f32 %v1080, 1.442695
        %v1100 = vpow.pop %v1099
        %v1101 = vmul.f32 %v1081, 1.442695
        %v1102 = vpow.pop %v1101
        %v1103 = vmul.f32 %v1082, 1.442695
        %v1104 = vpow.pop %v1103
        %v1105 = vmul.f32 %v1083, 1.442695
        %v1106 = vpow.pop %v1105
        %v1107 = vmul.f32 %v1084, 1.442695
        %v1108 = vpow.pop %v1107
        %v1109 = vmul.f32 %v1085, 1.442695
        %v1110 = vpow.pop %v1109
        %v1111 = vmul.f32 %v1086, 1.442695
        %v1112 = vpow.pop %v1111
        %v1113 = vmul.f32 %v1087, 1.442695
        %v1114 = vpow.pop %v1113
        %v1115 = vmul.f32 %v1088, 1.442695
        %v1116 = vpow.pop %v1115
        %v1117 = vmul.f32 %v1089, 1.442695
        %v1118 = vpow.pop %v1117
        %v1119 = vmul.f32 %v1090, 1.442695
        %v1120 = vpow.pop %v1119
        %v1121 = vmul.f32 %v1091, 1.442695
        %v1122 = vpow.pop %v1121
        %v1123 = vmul.f32 %v1092, 1.442695
        %v1124 = vpow.pop %v1123
        %v1125 = vadd.f32 %v1094, 1.0
        %v1126 = vadd.f32 %v1096, 1.0
        %v1127 = vadd.f32 %v1098, 1.0
        %v1128 = vadd.f32 %v1100, 1.0
        %v1129 = vadd.f32 %v1102, 1.0
        %v1130 = vadd.f32 %v1104, 1.0
        %v1131 = vadd.f32 %v1106, 1.0
        %v1132 = vadd.f32 %v1108, 1.0
        %v1133 = vadd.f32 %v1110, 1.0
        %v1134 = vadd.f32 %v1112, 1.0
        %v1135 = vadd.f32 %v1114, 1.0
        %v1136 = vadd.f32 %v1116, 1.0
        %v1137 = vadd.f32 %v1118, 1.0
        %v1138 = vadd.f32 %v1120, 1.0
        %v1139 = vadd.f32 %v1122, 1.0
        %v1140 = vadd.f32 %v1124, 1.0
        %v1141 = vrcp.pop %v1125
        %v1142 = vrcp.pop %v1126
        %v1143 = vrcp.pop %v1127
        %v1144 = vrcp.pop %v1128
        %v1145 = vrcp.pop %v1129
        %v1146 = vrcp.pop %v1130
        %v1147 = vrcp.pop %v1131
        %v1148 = vrcp.pop %v1132
        %v1149 = vrcp.pop %v1133
        %v1150 = vrcp.pop %v1134
        %v1151 = vrcp.pop %v1135
        %v1152 = vrcp.pop %v1136
        %v1153 = vrcp.pop %v1137
        %v1154 = vrcp.pop %v1138
        %v1155 = vrcp.pop %v1139
        %v1156 = vrcp.pop %v1140
        %v1157 = vmul.f32 %v1061, %v1141
        %v1158 = vmul.f32 %v1062, %v1142
        %v1159 = vmul.f32 %v1063, %v1143
        %v1160 = vmul.f32 %v1064, %v1144
        %v1161 = vmul.f32 %v1065, %v1145
        %v1162 = vmul.f32 %v1066, %v1146
        %v1163 = vmul.f32 %v1067, %v1147
        %v1164 = vmul.f32 %v1068, %v1148
        %v1165 = vmul.f32 %v1069, %v1149
        %v1166 = vmul.f32 %v1070, %v1150
        %v1167 = vmul.f32 %v1071, %v1151
        %v1168 = vmul.f32 %v1072, %v1152
        %v1169 = vmul.f32 %v1073, %v1153
        %v1170 = vmul.f32 %v1074, %v1154
        %v1171 = vmul.f32 %v1075, %v1155
        %v1172 = vmul.f32 %v1076, %v1156
        %1173 = vst [vmem:[%s303] sm:$0xff] %v1157
        %1174 = vst [vmem:[%s303 + $0x8] sm:$0xff] %v1158
        %1175 = vst [vmem:[%s303 + $0x10] sm:$0xff] %v1159
        %1176 = vst [vmem:[%s303 + $0x18] sm:$0xff] %v1160
        %1177 = vst [vmem:[%s303 + $0x20] sm:$0xff] %v1161
        %1178 = vst [vmem:[%s303 + $0x28] sm:$0xff] %v1162
        %1179 = vst [vmem:[%s303 + $0x30] sm:$0xff] %v1163
        %1180 = vst [vmem:[%s303 + $0x38] sm:$0xff] %v1164
        %1181 = vst [vmem:[%s303 + $0x40] sm:$0xff] %v1165
        %1182 = vst [vmem:[%s303 + $0x48] sm:$0xff] %v1166
        %1183 = vst [vmem:[%s303 + $0x50] sm:$0xff] %v1167
        %1184 = vst [vmem:[%s303 + $0x58] sm:$0xff] %v1168
        %1185 = vst [vmem:[%s303 + $0x60] sm:$0xff] %v1169
        %1186 = vst [vmem:[%s303 + $0x68] sm:$0xff] %v1170
        %1187 = vst [vmem:[%s303 + $0x70] sm:$0xff] %v1171
        %1188 = vst [vmem:[%s303 + $0x78] sm:$0xff] %v1172
        %s1189 = sand.u32 %s161, 1
        %s1190 = scalar_lea.sflag [#allocation3], %s1189
        %s1191 = sand.u32 %s161, 1
        %s1192 = smul.addr %s1191, 128
        %s1193 = scalar_lea.vmem [#allocation2], %s1192
        // Predicated region
        $region37: #{tpu_custom_call.1} parent=35 // pred_check
          %p1194 = pneg %p171
        $region38: #{tpu_custom_call.1} parent=35 // pred_check_branch
          %1196 = sbr.rel (%p1194) target = $region40
        $region39: #{tpu_custom_call.1} parent=35 // pred_region
          %s1197 = smul.u32 16, %s25
          %s1199 = ssub.s32 2048, 2048
          %1200 = vsyncadd %s1190, %s1199
          %s1201 = sadd.s32 %s24, %s1197
          %s1202 = smul.addr %s23, 32
          %s1203 = sadd.s32 %s1201, %s1202
          %s1204 = smul.addr %s1203, 128
          %s1205 = scalar_lea.hbm %s4, %s1204
          %s1206 = sshll.u32 %s1193, 4
          %s1207 = int_to_ptr.vmem [resolvable:$true] %s1206
          %1212 = dma.vmem_to_hbm [thread:$0]  %s1207, 2048, %s1205, %s1190, 128, 128, 8
        $region40: #{tpu_custom_call.1} parent=35 // pred_fallthru
          _
      $region36: #{tpu_custom_call.1} parent=5 // pred_fallthru
        _
      %p1213 = scmp.le.s32.totalorder 2, %s13
      // Predicated region
      $region41: #{tpu_custom_call.1} parent=5 // pred_check
        %p1214 = pneg %p1213
      $region42: #{tpu_custom_call.1} parent=5 // pred_check_branch
        %1216 = sbr.rel (%p1214) target = $region44
      $region43: #{tpu_custom_call.1} parent=5 // pred_region
        %s1217 = ssub.s32 %s13, 2
        // Predicated region
        $region45: #{tpu_custom_call.1} parent=43 // pred_check
          %p1218 = pneg %p177
        $region46: #{tpu_custom_call.1} parent=43 // pred_check_branch
          %1220 = sbr.rel (%p1218) target = $region48
        $region47: #{tpu_custom_call.1} parent=43 // pred_region
          %s1221 = sand.u32 %s162, 1
          %s1222 = scalar_lea.sflag [#allocation3], %s1221
          %s1223 = sand.u32 %s162, 1
          %s1224 = smul.addr %s1223, 128
          %s1225 = scalar_lea.vmem [#allocation2], %s1224
          %1226 = dma.done %s1222, 2048
        $region48: #{tpu_custom_call.1} parent=43 // pred_fallthru
          _
      $region44: #{tpu_custom_call.1} parent=5 // pred_fallthru
        _
    $region6: #{tpu_custom_call.1} parent=1 // loop_footer
      %s17 = sadd.s32 1, %s13
    $region7: #{tpu_custom_call.1} parent=1 // loop_footer_branch
      %12 = sbr.rel target = $region3
    $region8: #{tpu_custom_call.1} parent=1 // loop_exit
      _
    %1227 = vsyncpa [#allocation3], 1
    %s1228 = scalar_lea.sflag [#allocation3], 1
    %1229 = vsyncpa %s1228, 1

</llo_original>
